<compile_context>
chip_gen: v6e
topology: v6e:2x2x1
jax: 0.10.0
libtpu: 0.0.40
codegen_flags: <defaults>
</compile_context>

<pallas_src>
import jax
import jax.numpy as jnp
from jax import lax
from jax.experimental import pallas as pl
from jax.experimental.pallas import tpu as pltpu


def _crp_kernel(x_ref, w_ref, b_ref, out_ref):
    # x_ref / out_ref: (S*C, NB)  rows ordered row = s*C + c, lanes = batch.
    # w_ref: (Co, C)   conv weights pre-summed over their 3x3 spatial taps.
    # b_ref: (Co, 1)
    Co, C = w_ref.shape
    S = x_ref.shape[0] // C

    # Per-channel max of relu(x) over the S spatial positions.  Each chunk
    # x_ref[s*C:(s+1)*C, :] is a (C, NB) tile (sublane-aligned when C % 8 == 0)
    # so this is S-1 elementwise VPU maxes, all lanes useful.
    m = jnp.maximum(x_ref[pl.ds(0, C), :], 0.0)
    for s in range(1, S):
        m = jnp.maximum(m, jnp.maximum(x_ref[pl.ds(s * C, C), :], 0.0))

    # Tiny (Co, C) @ (C, NB) contraction + bias; negligible either way
    # (review: do NOT spend effort tiling this for the MXU).
    conv = jnp.dot(w_ref[...], m, preferred_element_type=jnp.float32)
    conv = conv + b_ref[...]                       # (Co, NB); lane-broadcast bias

    # Residual add with the ORIGINAL input, broadcasting the 1x1 conv result
    # over the S spatial positions.  x_ref is re-read per chunk (not held live
    # across the reduce/dot), so Mosaic streams instead of spilling vregs.
    for s in range(S):
        sl = pl.ds(s * C, C)
        out_ref[sl, :] = (x_ref[sl, :] + conv).astype(out_ref.dtype)


def _pick_lane_block(n):
    """Batch (lane) block size.

    Small N: one block covering the full (possibly ragged) lane extent.
    Large N: lane-dense blocks (multiple of 128), target ~1024 lanes per block
    (near-roofline streaming) while keeping >= 2 grid steps so the 'parallel'
    axis can shard across both v7x TensorCores.
    """
    if n <= 128:
        return n
    nb = max(128, (n // 2 // 128) * 128)   # <= n/2  ->  at least 2 grid steps
    return min(1024, nb)


@jax.jit
def chained_residual_pooling(x_nchw, weight, bias):
    """x_nchw: (N, C, H, W) f32; weight: (Co, C, 3, 3) f32; bias: (Co,) f32."""
    N, C, H, W = x_nchw.shape
    Co, Ci, KH, KW = weight.shape
    assert Ci == C and Co == C, "residual add requires Co == C"
    assert H == KH and W == KW, (
        "PyTorch forward only broadcasts when the valid conv output is 1x1 "
        "(i.e. H == W == 3)")

    S = H * W
    R = S * C

    # Layout plumbing (review): put batch on the lane axis.
    # (N, C, H, W) -> (H, W, C, N) -> (S*C, N) with row = (h*W + w)*C + c.
    x2 = jnp.transpose(x_nchw.astype(jnp.float32), (2, 3, 1, 0)).reshape(R, N)
    # Pre-sum the conv weights over the 3x3 spatial taps -> (Co, C).
    w_sum = weight.astype(jnp.float32).sum(axis=(2, 3))
    b = bias.astype(jnp.float32).reshape(Co, 1)

    NB = _pick_lane_block(N)
    grid = (pl.cdiv(N, NB),)

    # VMEM budget (review): padded block = ceil(R/8)*8 rows x NB lanes x 4 B.
    # For C=8, NB=1024 that is ~288 KiB per buffer; x-in + out, double-buffered,
    # stays ~1.2 MiB — far below v5e's 16 MiB scoped default and v7x's 32 MiB,
    # so no vmem_limit_bytes override is needed.  Everything stays f32 (no bf16
    # intermediates; v5e VPU/EUP have no bf16 support).
    pad_rows = -(-R // 8) * 8
    assert 4 * pad_rows * max(NB, 128) * 4 < 12 * 1024 * 1024, "tile too big"

    out2 = pl.pallas_call(
        _crp_kernel,
        out_shape=jax.ShapeDtypeStruct((R, N), jnp.float32),
        grid_spec=pltpu.PrefetchScalarGridSpec(
            num_scalar_prefetch=0,
            grid=grid,
            in_specs=[
                pl.BlockSpec((R, NB), lambda i: (0, i)),
                pl.BlockSpec((Co, C), lambda i: (0, 0)),   # fetched once
                pl.BlockSpec((Co, 1), lambda i: (0, 0)),   # fetched once
            ],
            out_specs=pl.BlockSpec((R, NB), lambda i: (0, i)),
        ),
        # x2 is a kernel-local temp; alias it onto the output to drop one full
        # HBM allocation (each lane-block only overwrites its own input region,
        # which is never read again).
        input_output_aliases={0: 0},
        compiler_params=pltpu.CompilerParams(
            dimension_semantics=("parallel",)),
    )(x2, w_sum, b)

    # Back to NCHW for the caller (layout plumbing only).
    return jnp.transpose(out2.reshape(H, W, C, N), (3, 2, 0, 1))


def _reference(x, weight, bias):
    """Pure-JAX reference matching the PyTorch forward (NCHW)."""
    r = jnp.maximum(x, 0.0)
    pooled = lax.reduce_window(
        r, jnp.array(-jnp.inf, x.dtype), lax.max,
        (1, 1, 5, 5), (1, 1, 1, 1), ((0, 0), (0, 0), (2, 2), (2, 2)))
    conv = lax.conv_general_dilated(
        pooled, weight, (1, 1), 'VALID',
        dimension_numbers=('NCHW', 'OIHW', 'NCHW'))
    conv = conv + bias[None, :, None, None]
    return conv + x                       # (N,Co,1,1) + (N,C,H,W) broadcast


if __name__ == "__main__":
    key = jax.random.PRNGKey(0)
    k1, k2, k3, k4 = jax.random.split(key, 4)

    # Shapes implied by the module: the valid 3x3 conv output must be 1x1 and
    # channels must match for the residual broadcast to be legal.
    N, C, H, W = 2, 8, 3, 3
    x = jax.random.normal(k1, (N, C, H, W), jnp.float32)
    weight = 0.1 * jax.random.normal(k2, (C, C, 3, 3), jnp.float32)
    bias = 0.1 * jax.random.normal(k3, (C,), jnp.float32)

    out = jax.block_until_ready(chained_residual_pooling(x, weight, bias))
    ref = _reference(x, weight, bias)
    assert out.shape == ref.shape == (N, C, H, W)
    if not bool(jnp.allclose(out, ref, atol=1e-4, rtol=1e-4)):
        raise AssertionError("Pallas kernel output mismatch vs reference (small N)")

    # Also exercise the lane-dense multi-block path (NB=128, 3 grid steps,
    # ragged last block) that the large-batch tuning targets.
    N2 = 300
    x2 = jax.random.normal(k4, (N2, C, H, W), jnp.float32)
    out2 = jax.block_until_ready(chained_residual_pooling(x2, weight, bias))
    ref2 = _reference(x2, weight, bias)
    if not bool(jnp.allclose(out2, ref2, atol=1e-4, rtol=1e-4)):
        raise AssertionError("Pallas kernel output mismatch vs reference (large N)")

    print("KERNEL_OK")
</pallas_src>

<mosaic_0001>
module attributes {stable_mosaic.version = 11 : i64} {
  func.func @_crp_kernel(%arg0: i32, %arg1: memref<72x2xf32, #tpu.memory_space<vmem>>, %arg2: memref<8x8xf32, #tpu.memory_space<vmem>>, %arg3: memref<8x1xf32, #tpu.memory_space<vmem>>, %arg4: memref<72x2xf32, #tpu.memory_space<vmem>>) attributes {dimension_semantics = [#tpu.dimension_semantics<parallel>], iteration_bounds = array<i64: 1>, scalar_prefetch = 0 : i64, scratch_operands = 0 : i64, tpu.core_type = #tpu.core_type<tc>, window_params = [{transform_indices = @transform_0, window_bounds = array<i64: 72, 2>}, {pipeline_mode = #tpu.pipeline_mode<synchronous>, transform_indices = @transform_1, window_bounds = array<i64: 8, 8>}, {pipeline_mode = #tpu.pipeline_mode<synchronous>, transform_indices = @transform_2, window_bounds = array<i64: 8, 1>}, {transform_indices = @transform_3, window_bounds = array<i64: 72, 2>}]} {
    %c0 = arith.constant 0 : index
    %c0_0 = arith.constant 0 : index
    %0 = vector.load %arg1[%c0, %c0_0] : memref<72x2xf32, #tpu.memory_space<vmem>>, vector<8x2xf32>
    %cst = arith.constant 0.000000e+00 : f32
    %1 = vector.broadcast %cst : f32 to vector<8x2xf32>
    %2 = arith.maximumf %0, %1 : vector<8x2xf32>
    %c8 = arith.constant 8 : index
    %c0_1 = arith.constant 0 : index
    %3 = vector.load %arg1[%c8, %c0_1] : memref<72x2xf32, #tpu.memory_space<vmem>>, vector<8x2xf32>
    %cst_2 = arith.constant 0.000000e+00 : f32
    %4 = vector.broadcast %cst_2 : f32 to vector<8x2xf32>
    %5 = arith.maximumf %3, %4 : vector<8x2xf32>
    %6 = arith.maximumf %2, %5 : vector<8x2xf32>
    %c16 = arith.constant 16 : index
    %c0_3 = arith.constant 0 : index
    %7 = vector.load %arg1[%c16, %c0_3] : memref<72x2xf32, #tpu.memory_space<vmem>>, vector<8x2xf32>
    %cst_4 = arith.constant 0.000000e+00 : f32
    %8 = vector.broadcast %cst_4 : f32 to vector<8x2xf32>
    %9 = arith.maximumf %7, %8 : vector<8x2xf32>
    %10 = arith.maximumf %6, %9 : vector<8x2xf32>
    %c24 = arith.constant 24 : index
    %c0_5 = arith.constant 0 : index
    %11 = vector.load %arg1[%c24, %c0_5] : memref<72x2xf32, #tpu.memory_space<vmem>>, vector<8x2xf32>
    %cst_6 = arith.constant 0.000000e+00 : f32
    %12 = vector.broadcast %cst_6 : f32 to vector<8x2xf32>
    %13 = arith.maximumf %11, %12 : vector<8x2xf32>
    %14 = arith.maximumf %10, %13 : vector<8x2xf32>
    %c32 = arith.constant 32 : index
    %c0_7 = arith.constant 0 : index
    %15 = vector.load %arg1[%c32, %c0_7] : memref<72x2xf32, #tpu.memory_space<vmem>>, vector<8x2xf32>
    %cst_8 = arith.constant 0.000000e+00 : f32
    %16 = vector.broadcast %cst_8 : f32 to vector<8x2xf32>
    %17 = arith.maximumf %15, %16 : vector<8x2xf32>
    %18 = arith.maximumf %14, %17 : vector<8x2xf32>
    %c40 = arith.constant 40 : index
    %c0_9 = arith.constant 0 : index
    %19 = vector.load %arg1[%c40, %c0_9] : memref<72x2xf32, #tpu.memory_space<vmem>>, vector<8x2xf32>
    %cst_10 = arith.constant 0.000000e+00 : f32
    %20 = vector.broadcast %cst_10 : f32 to vector<8x2xf32>
    %21 = arith.maximumf %19, %20 : vector<8x2xf32>
    %22 = arith.maximumf %18, %21 : vector<8x2xf32>
    %c48 = arith.constant 48 : index
    %c0_11 = arith.constant 0 : index
    %23 = vector.load %arg1[%c48, %c0_11] : memref<72x2xf32, #tpu.memory_space<vmem>>, vector<8x2xf32>
    %cst_12 = arith.constant 0.000000e+00 : f32
    %24 = vector.broadcast %cst_12 : f32 to vector<8x2xf32>
    %25 = arith.maximumf %23, %24 : vector<8x2xf32>
    %26 = arith.maximumf %22, %25 : vector<8x2xf32>
    %c56 = arith.constant 56 : index
    %c0_13 = arith.constant 0 : index
    %27 = vector.load %arg1[%c56, %c0_13] : memref<72x2xf32, #tpu.memory_space<vmem>>, vector<8x2xf32>
    %cst_14 = arith.constant 0.000000e+00 : f32
    %28 = vector.broadcast %cst_14 : f32 to vector<8x2xf32>
    %29 = arith.maximumf %27, %28 : vector<8x2xf32>
    %30 = arith.maximumf %26, %29 : vector<8x2xf32>
    %c64 = arith.constant 64 : index
    %c0_15 = arith.constant 0 : index
    %31 = vector.load %arg1[%c64, %c0_15] : memref<72x2xf32, #tpu.memory_space<vmem>>, vector<8x2xf32>
    %cst_16 = arith.constant 0.000000e+00 : f32
    %32 = vector.broadcast %cst_16 : f32 to vector<8x2xf32>
    %33 = arith.maximumf %31, %32 : vector<8x2xf32>
    %34 = arith.maximumf %30, %33 : vector<8x2xf32>
    %c0_17 = arith.constant 0 : index
    %c0_18 = arith.constant 0 : index
    %35 = vector.load %arg2[%c0_17, %c0_18] : memref<8x8xf32, #tpu.memory_space<vmem>>, vector<8x8xf32>
    %cst_19 = arith.constant dense<0.000000e+00> : vector<8x2xf32>
    %36 = tpu.matmul %35, %34, %cst_19 {dimension_numbers = #tpu.dot_dimension_numbers<[1], [0], [0], [1], [0, 0, 1, 1], [], []>} : vector<8x8xf32>, vector<8x2xf32>, vector<8x2xf32> -> vector<8x2xf32>
    %c0_20 = arith.constant 0 : index
    %c0_21 = arith.constant 0 : index
    %37 = vector.load %arg3[%c0_20, %c0_21] : memref<8x1xf32, #tpu.memory_space<vmem>>, vector<8x1xf32>
    %38 = vector.broadcast %37 : vector<8x1xf32> to vector<8x2xf32>
    %39 = arith.addf %36, %38 : vector<8x2xf32>
    %c0_22 = arith.constant 0 : index
    %c0_23 = arith.constant 0 : index
    %40 = vector.load %arg1[%c0_22, %c0_23] : memref<72x2xf32, #tpu.memory_space<vmem>>, vector<8x2xf32>
    %41 = arith.addf %40, %39 : vector<8x2xf32>
    %c0_24 = arith.constant 0 : index
    %c0_25 = arith.constant 0 : index
    %42 = vector.load %arg4[%c0_24, %c0_25] : memref<72x2xf32, #tpu.memory_space<vmem>>, vector<8x2xf32>
    tpu.vector_store %arg4[%c0_24, %c0_25], %41 {strides = array<i32>} : memref<72x2xf32, #tpu.memory_space<vmem>>, vector<8x2xf32>,
    %c8_26 = arith.constant 8 : index
    %c0_27 = arith.constant 0 : index
    %43 = vector.load %arg1[%c8_26, %c0_27] : memref<72x2xf32, #tpu.memory_space<vmem>>, vector<8x2xf32>
    %44 = arith.addf %43, %39 : vector<8x2xf32>
    %c8_28 = arith.constant 8 : index
    %c0_29 = arith.constant 0 : index
    %45 = vector.load %arg4[%c8_28, %c0_29] : memref<72x2xf32, #tpu.memory_space<vmem>>, vector<8x2xf32>
    tpu.vector_store %arg4[%c8_28, %c0_29], %44 {strides = array<i32>} : memref<72x2xf32, #tpu.memory_space<vmem>>, vector<8x2xf32>,
    %c16_30 = arith.constant 16 : index
    %c0_31 = arith.constant 0 : index
    %46 = vector.load %arg1[%c16_30, %c0_31] : memref<72x2xf32, #tpu.memory_space<vmem>>, vector<8x2xf32>
    %47 = arith.addf %46, %39 : vector<8x2xf32>
    %c16_32 = arith.constant 16 : index
    %c0_33 = arith.constant 0 : index
    %48 = vector.load %arg4[%c16_32, %c0_33] : memref<72x2xf32, #tpu.memory_space<vmem>>, vector<8x2xf32>
    tpu.vector_store %arg4[%c16_32, %c0_33], %47 {strides = array<i32>} : memref<72x2xf32, #tpu.memory_space<vmem>>, vector<8x2xf32>,
    %c24_34 = arith.constant 24 : index
    %c0_35 = arith.constant 0 : index
    %49 = vector.load %arg1[%c24_34, %c0_35] : memref<72x2xf32, #tpu.memory_space<vmem>>, vector<8x2xf32>
    %50 = arith.addf %49, %39 : vector<8x2xf32>
    %c24_36 = arith.constant 24 : index
    %c0_37 = arith.constant 0 : index
    %51 = vector.load %arg4[%c24_36, %c0_37] : memref<72x2xf32, #tpu.memory_space<vmem>>, vector<8x2xf32>
    tpu.vector_store %arg4[%c24_36, %c0_37], %50 {strides = array<i32>} : memref<72x2xf32, #tpu.memory_space<vmem>>, vector<8x2xf32>,
    %c32_38 = arith.constant 32 : index
    %c0_39 = arith.constant 0 : index
    %52 = vector.load %arg1[%c32_38, %c0_39] : memref<72x2xf32, #tpu.memory_space<vmem>>, vector<8x2xf32>
    %53 = arith.addf %52, %39 : vector<8x2xf32>
    %c32_40 = arith.constant 32 : index
    %c0_41 = arith.constant 0 : index
    %54 = vector.load %arg4[%c32_40, %c0_41] : memref<72x2xf32, #tpu.memory_space<vmem>>, vector<8x2xf32>
    tpu.vector_store %arg4[%c32_40, %c0_41], %53 {strides = array<i32>} : memref<72x2xf32, #tpu.memory_space<vmem>>, vector<8x2xf32>,
    %c40_42 = arith.constant 40 : index
    %c0_43 = arith.constant 0 : index
    %55 = vector.load %arg1[%c40_42, %c0_43] : memref<72x2xf32, #tpu.memory_space<vmem>>, vector<8x2xf32>
    %56 = arith.addf %55, %39 : vector<8x2xf32>
    %c40_44 = arith.constant 40 : index
    %c0_45 = arith.constant 0 : index
    %57 = vector.load %arg4[%c40_44, %c0_45] : memref<72x2xf32, #tpu.memory_space<vmem>>, vector<8x2xf32>
    tpu.vector_store %arg4[%c40_44, %c0_45], %56 {strides = array<i32>} : memref<72x2xf32, #tpu.memory_space<vmem>>, vector<8x2xf32>,
    %c48_46 = arith.constant 48 : index
    %c0_47 = arith.constant 0 : index
    %58 = vector.load %arg1[%c48_46, %c0_47] : memref<72x2xf32, #tpu.memory_space<vmem>>, vector<8x2xf32>
    %59 = arith.addf %58, %39 : vector<8x2xf32>
    %c48_48 = arith.constant 48 : index
    %c0_49 = arith.constant 0 : index
    %60 = vector.load %arg4[%c48_48, %c0_49] : memref<72x2xf32, #tpu.memory_space<vmem>>, vector<8x2xf32>
    tpu.vector_store %arg4[%c48_48, %c0_49], %59 {strides = array<i32>} : memref<72x2xf32, #tpu.memory_space<vmem>>, vector<8x2xf32>,
    %c56_50 = arith.constant 56 : index
    %c0_51 = arith.constant 0 : index
    %61 = vector.load %arg1[%c56_50, %c0_51] : memref<72x2xf32, #tpu.memory_space<vmem>>, vector<8x2xf32>
    %62 = arith.addf %61, %39 : vector<8x2xf32>
    %c56_52 = arith.constant 56 : index
    %c0_53 = arith.constant 0 : index
    %63 = vector.load %arg4[%c56_52, %c0_53] : memref<72x2xf32, #tpu.memory_space<vmem>>, vector<8x2xf32>
    tpu.vector_store %arg4[%c56_52, %c0_53], %62 {strides = array<i32>} : memref<72x2xf32, #tpu.memory_space<vmem>>, vector<8x2xf32>,
    %c64_54 = arith.constant 64 : index
    %c0_55 = arith.constant 0 : index
    %64 = vector.load %arg1[%c64_54, %c0_55] : memref<72x2xf32, #tpu.memory_space<vmem>>, vector<8x2xf32>
    %65 = arith.addf %64, %39 : vector<8x2xf32>
    %c64_56 = arith.constant 64 : index
    %c0_57 = arith.constant 0 : index
    %66 = vector.load %arg4[%c64_56, %c0_57] : memref<72x2xf32, #tpu.memory_space<vmem>>, vector<8x2xf32>
    tpu.vector_store %arg4[%c64_56, %c0_57], %65 {strides = array<i32>} : memref<72x2xf32, #tpu.memory_space<vmem>>, vector<8x2xf32>,
    return
  }
  func.func @transform_0(%arg0: i32) -> (i32, i32) {
    %c0_i32 = arith.constant 0 : i32
    %c0_i32_0 = arith.constant 0 : i32
    return %c0_i32, %arg0 : i32, i32
  }
  func.func @transform_1(%arg0: i32) -> (i32, i32) {
    %c0_i32 = arith.constant 0 : i32
    %c0_i32_0 = arith.constant 0 : i32
    %c0_i32_1 = arith.constant 0 : i32
    return %c0_i32, %c0_i32_0 : i32, i32
  }
  func.func @transform_2(%arg0: i32) -> (i32, i32) {
    %c0_i32 = arith.constant 0 : i32
    %c0_i32_0 = arith.constant 0 : i32
    %c0_i32_1 = arith.constant 0 : i32
    return %c0_i32, %c0_i32_0 : i32, i32
  }
  func.func @transform_3(%arg0: i32) -> (i32, i32) {
    %c0_i32 = arith.constant 0 : i32
    %c0_i32_0 = arith.constant 0 : i32
    return %c0_i32, %arg0 : i32, i32
  }
}

</mosaic_0001>

<llo_original>
// kernel: chained_residual_pooling.1
$region0: #{chained_residual_pooling.1}
  #allocation0 [shape = 'u32[]', space=smem, size = 0x4, offset = 0x4, fixed_abs, tag = 'smem constant byte address 0x4 - core index']
  #allocation1 [shape = 'u32[144,128]{1,0:T(1,128)}', space=vmem, size = 0x12000, scoped, tag = 'internal scratch']
  %s0 = inlined_call_operand.vmem [shape: f32[72,2], index: 0, kind: input, shape index: {}, may-alias: {0,3}]
  %s1 = inlined_call_operand.vmem [shape: f32[8,8], index: 1, kind: input, shape index: {}]
  %s2 = inlined_call_operand.vmem [shape: f32[8,1], index: 2, kind: input, shape index: {}]
  %s3 = inlined_call_operand.vmem [shape: f32[72,2], index: 3, kind: output, shape index: {}, may-alias: {0,3}]
  %s4 = sld [smem:[#allocation0]]
  $region22: #{chained_residual_pooling.1} parent=0
    _
  %s6 = ssub.s32 1, %s4
  %s7 = scalar_select 0, %s6, %s4
  // Predicated region
  $region2: #{chained_residual_pooling.1} parent=0 // pred_check
    _
  $region3: #{chained_residual_pooling.1} parent=0 // pred_check_branch
    %9 = sbr.rel (0) target = $region5
  $region4: #{chained_residual_pooling.1} parent=0 // pred_region
    _
  $region5: #{chained_residual_pooling.1} parent=0 // pred_fallthru
    _
  // Predicated region
  $region6: #{chained_residual_pooling.1} parent=0 // pred_check
    _
  $region7: #{chained_residual_pooling.1} parent=0 // pred_check_branch
    %11 = sbr.rel (0) target = $region9
  $region8: #{chained_residual_pooling.1} parent=0 // pred_region
    _
  $region9: #{chained_residual_pooling.1} parent=0 // pred_fallthru
    _
  // Predicated region
  $region10: #{chained_residual_pooling.1} parent=0 // pred_check
    _
  $region11: #{chained_residual_pooling.1} parent=0 // pred_check_branch
    %13 = sbr.rel (0) target = $region13
  $region12: #{chained_residual_pooling.1} parent=0 // pred_region
    _
  $region13: #{chained_residual_pooling.1} parent=0 // pred_fallthru
    _
  %v14 = vld [vmem:[%s0] sm:$0xff]
  %v15 = vmax.f32 %v14, 0.0
  %v16 = vld [vmem:[%s0 + $0x8] sm:$0xff]
  %v17 = vmax.f32 %v16, 0.0
  %v18 = vmax.f32 %v15, %v17
  %v19 = vld [vmem:[%s0 + $0x10] sm:$0xff]
  %v20 = vmax.f32 %v19, 0.0
  %v21 = vmax.f32 %v18, %v20
  %v22 = vld [vmem:[%s0 + $0x18] sm:$0xff]
  %v23 = vmax.f32 %v22, 0.0
  %v24 = vmax.f32 %v21, %v23
  %v25 = vld [vmem:[%s0 + $0x20] sm:$0xff]
  %v26 = vmax.f32 %v25, 0.0
  %v27 = vmax.f32 %v24, %v26
  %v28 = vld [vmem:[%s0 + $0x28] sm:$0xff]
  %v29 = vmax.f32 %v28, 0.0
  %v30 = vmax.f32 %v27, %v29
  %v31 = vld [vmem:[%s0 + $0x30] sm:$0xff]
  %v32 = vmax.f32 %v31, 0.0
  %v33 = vmax.f32 %v30, %v32
  %v34 = vld [vmem:[%s0 + $0x38] sm:$0xff]
  %v35 = vmax.f32 %v34, 0.0
  %v36 = vmax.f32 %v33, %v35
  %v37 = vld [vmem:[%s0 + $0x40] sm:$0xff]
  %v38 = vmax.f32 %v37, 0.0
  %v39 = vmax.f32 %v36, %v38
  %v40 = vld [vmem:[%s1] sm:$0xff]
  %v41 = vld [vmem:[%s2] sm:$0xff]
  %43 = vset.pattern.permute.xlu0 0
  %44 = vperm.xlu0 %43, %v41
  %v45 = vpop.permute.xlu0 %44
  %vm47 = vcmask 64512
  %v49 = vsel %vm47, %v40, 0
  %51 = vmatprep.subr.mxu0 0.0
  %52 = vmatpush1.msra.mxu0 0.0
  %53 = vmatprep.subr.mxu0 0.0
  %54 = vmatpush1.msra.mxu0 0.0
  %55 = vmatprep.subr.mxu0 0.0
  %56 = vmatpush1.msra.mxu0 0.0
  %57 = vmatprep.subr.mxu0 0.0
  %58 = vmatpush1.msra.mxu0 0.0
  %59 = vmatprep.subr.mxu0 0.0
  %60 = vmatpush1.msra.mxu0 0.0
  %61 = vmatprep.subr.mxu0 0.0
  %62 = vmatpush1.msra.mxu0 0.0
  %63 = vmatprep.subr.mxu0 0.0
  %64 = vmatpush1.msra.mxu0 0.0
  %65 = vmatprep.subr.mxu0 0.0
  %66 = vmatpush1.msra.mxu0 0.0
  %67 = vmatprep.subr.mxu0 0.0
  %68 = vmatpush1.msra.mxu0 0.0
  %69 = vmatprep.subr.mxu0 0.0
  %70 = vmatpush1.msra.mxu0 0.0
  %71 = vmatprep.subr.mxu0 0.0
  %72 = vmatpush1.msra.mxu0 0.0
  %73 = vmatprep.subr.mxu0 0.0
  %74 = vmatpush1.msra.mxu0 0.0
  %75 = vmatprep.subr.mxu0 0.0
  %76 = vmatpush1.msra.mxu0 0.0
  %77 = vmatprep.subr.mxu0 0.0
  %78 = vmatpush1.msra.mxu0 0.0
  %79 = vmatprep.subr.mxu0 0.0
  %80 = vmatpush1.msra.mxu0 0.0
  %81 = vmatprep.subr.mxu0 0.0
  %82 = vmatpush1.msra.mxu0 %v39
  %83 = vmatprep.subr.mxu0 0.0
  %84 = vmatpush2.msra.mxu0 0.0
  %85 = vmatprep.subr.mxu0 0.0
  %86 = vmatpush2.msra.mxu0 0.0
  %87 = vmatprep.subr.mxu0 0.0
  %88 = vmatpush2.msra.mxu0 0.0
  %89 = vmatprep.subr.mxu0 0.0
  %90 = vmatpush2.msra.mxu0 0.0
  %91 = vmatprep.subr.mxu0 0.0
  %92 = vmatpush2.msra.mxu0 0.0
  %93 = vmatprep.subr.mxu0 0.0
  %94 = vmatpush2.msra.mxu0 0.0
  %95 = vmatprep.subr.mxu0 0.0
  %96 = vmatpush2.msra.mxu0 0.0
  %97 = vmatprep.subr.mxu0 0.0
  %98 = vmatpush2.msra.mxu0 0.0
  %99 = vmatprep.subr.mxu0 0.0
  %100 = vmatpush2.msra.mxu0 0.0
  %101 = vmatprep.subr.mxu0 0.0
  %102 = vmatpush2.msra.mxu0 0.0
  %103 = vmatprep.subr.mxu0 0.0
  %104 = vmatpush2.msra.mxu0 0.0
  %105 = vmatprep.subr.mxu0 0.0
  %106 = vmatpush2.msra.mxu0 0.0
  %107 = vmatprep.subr.mxu0 0.0
  %108 = vmatpush2.msra.mxu0 0.0
  %109 = vmatprep.subr.mxu0 0.0
  %110 = vmatpush2.msra.mxu0 0.0
  %111 = vmatprep.subr.mxu0 0.0
  %112 = vmatpush2.msra.mxu0 0.0
  %113 = vmatprep.subr.mxu0 0.0
  %114 = vmatpush2.msra.mxu0 0.0
  %115 = vmatprep.mubr.f32.mxu0 0.0
  %116 = vmatmul.mubr.f32.gmra.mxu0 %v49
  %v117 = vpop.f32.mrf.mxu0
  %v118 = vadd.f32 %v45, %v117
  %v119 = vpop.f32.mrf.mxu0
  %120 = vdwg.mxu0
  %v121 = vadd.f32 %v14, %v118
  %vm122 = vcmask 15360
  %123 = vst.msk [vmem:[%s3] sm:$0xff] %vm122, %v121
  %v124 = vld [vmem:[%s0 + $0x8] sm:$0xff]
  %v125 = vadd.f32 %v124, %v118
  %126 = vst.msk [vmem:[%s3 + $0x8] sm:$0xff] %vm122, %v125
  %v127 = vld [vmem:[%s0 + $0x10] sm:$0xff]
  %v128 = vadd.f32 %v127, %v118
  %129 = vst.msk [vmem:[%s3 + $0x10] sm:$0xff] %vm122, %v128
  %v130 = vld [vmem:[%s0 + $0x18] sm:$0xff]
  %v131 = vadd.f32 %v130, %v118
  %132 = vst.msk [vmem:[%s3 + $0x18] sm:$0xff] %vm122, %v131
  %v133 = vld [vmem:[%s0 + $0x20] sm:$0xff]
  %v134 = vadd.f32 %v133, %v118
  %135 = vst.msk [vmem:[%s3 + $0x20] sm:$0xff] %vm122, %v134
  %v136 = vld [vmem:[%s0 + $0x28] sm:$0xff]
  %v137 = vadd.f32 %v136, %v118
  %138 = vst.msk [vmem:[%s3 + $0x28] sm:$0xff] %vm122, %v137
  %v139 = vld [vmem:[%s0 + $0x30] sm:$0xff]
  %v140 = vadd.f32 %v139, %v118
  %141 = vst.msk [vmem:[%s3 + $0x30] sm:$0xff] %vm122, %v140
  %v142 = vld [vmem:[%s0 + $0x38] sm:$0xff]
  %v143 = vadd.f32 %v142, %v118
  %144 = vst.msk [vmem:[%s3 + $0x38] sm:$0xff] %vm122, %v143
  %v145 = vld [vmem:[%s0 + $0x40] sm:$0xff]
  %v146 = vadd.f32 %v145, %v118
  %147 = vst.msk [vmem:[%s3 + $0x40] sm:$0xff] %vm122, %v146
  // Predicated region
  $region14: #{chained_residual_pooling.1} parent=0 // pred_check
    _
  $region15: #{chained_residual_pooling.1} parent=0 // pred_check_branch
    %149 = sbr.rel (0) target = $region17
  $region16: #{chained_residual_pooling.1} parent=0 // pred_region
    _
  $region17: #{chained_residual_pooling.1} parent=0 // pred_fallthru
    _
  // Predicated region
  $region18: #{chained_residual_pooling.1} parent=0 // pred_check
    _
  $region19: #{chained_residual_pooling.1} parent=0 // pred_check_branch
    %151 = sbr.rel (0) target = $region21
  $region20: #{chained_residual_pooling.1} parent=0 // pred_region
    _
  $region21: #{chained_residual_pooling.1} parent=0 // pred_fallthru
    _

</llo_original>
